<compile_context>
chip_gen: v6e
topology: v6e:2x2x1
jax: 0.10.0
libtpu: 0.0.40
codegen_flags: <defaults>
</compile_context>

<pallas_src>
import functools
import math

import jax
import jax.numpy as jnp
from jax.experimental import pallas as pl
from jax.experimental.pallas import tpu as pltpu


# --------------------------------------------------------------------------- activations
def _fast_mish(x):
    """Mish(x) = x * tanh(softplus(x)) = x * n / (n + 2) with n = e^x*(e^x+2).

    One exp + one approximate EUP reciprocal; guarded against exp overflow
    (for x > 20, Mish(x) == x to f32 precision)."""
    u = jnp.exp(jnp.minimum(x, 20.0))
    n = u * (u + 2.0)
    return jnp.where(x > 20.0, x, x * n * pl.reciprocal(n + 2.0, approx=True))


# ------------------------------------------------------------------------------- kernels
def _kv_proj_kernel(x_ref, w_ref, b_ref, kt_ref, v_ref, *, hc):
    """Fused K/V projection (bf16 MXU, f32 accumulate); K is emitted pre-transposed."""
    y = jnp.dot(x_ref[...], w_ref[...], preferred_element_type=jnp.float32)
    y = y + b_ref[...]                                   # f32 bias
    kt_ref[...] = y[:, :hc].T.astype(kt_ref.dtype)       # [hc, T] bf16
    v_ref[...] = y[:, hc:].astype(v_ref.dtype)           # [T, hc] bf16


def _attn_kernel(x_ref, w_ref, b_ref, kt_ref, v_ref, m_ref, o_ref, stats_ref,
                 *, heads, head_dim, n_valid, tile_rows):
    """Masked multi-head graph attention for one destination-row tile.

    Q/skip projection is fused here (x tile + Wq|Wskip); K^T/V are fully resident
    revisited (0,0) blocks; the int8 mask rows are the only O(N) streaming operand.
    Also emits GraphNorm partial sum / sum-of-squares for this tile."""
    hc = heads * head_dim
    # Fused Q / skip projection (1/sqrt(head_dim) already folded into Wq, bq).
    qs = jnp.dot(x_ref[...], w_ref[...], preferred_element_type=jnp.float32) + b_ref[...]
    q16 = qs[:, :hc].astype(jnp.bfloat16)                # [T, hc]
    skip = qs[:, hc:]                                    # [T, hc] f32

    kt = kt_ref[...]                                     # [hc, N] bf16
    v = v_ref[...]                                       # [N, hc] bf16
    edge = m_ref[...] > 0                                # [T, N] bool (int8 mask)
    # Rows with no in-edge aggregate to 0 (skip only), matching PyG scatter-softmax.
    row_valid = jnp.max(edge.astype(jnp.float32), axis=-1, keepdims=True)   # [T, 1]
    neg = jnp.float32(-1e30)

    outs = []
    for h in range(heads):                               # static unroll over heads
        lo = h * head_dim
        sc = jnp.dot(q16[:, lo:lo + head_dim], kt[lo:lo + head_dim, :],
                     preferred_element_type=jnp.float32)             # [T, N] f32
        sc = jnp.where(edge, sc, neg)                    # single mask select per head
        m = jnp.max(sc, axis=-1, keepdims=True)
        p = jnp.exp(sc - m)                              # masked entries underflow to 0
        den = jnp.sum(p, axis=-1, keepdims=True)         # >= 1 on valid rows
        inv = pl.reciprocal(den, approx=True) * row_valid            # [T, 1]
        # normalize AFTER the AV matmul: [T, C] multiply instead of [T, N]
        outs.append(jnp.dot(p.astype(jnp.bfloat16), v[:, lo:lo + head_dim],
                            preferred_element_type=jnp.float32) * inv)

    out = jnp.concatenate(outs, axis=-1) + skip          # [T, hc] f32
    o_ref[...] = out.astype(o_ref.dtype)

    # GraphNorm partials for this tile (padded rows excluded via static n_valid).
    base = pl.program_id(0) * tile_rows
    ridx = base + jax.lax.broadcasted_iota(jnp.int32, (tile_rows, 1), 0)
    valid = (ridx < n_valid).astype(jnp.float32)         # [T, 1]
    ov = out * valid
    psum = jnp.sum(ov, axis=0, keepdims=True)            # [1, hc]
    psq = jnp.sum(ov * out, axis=0, keepdims=True)       # [1, hc]
    rid = jax.lax.broadcasted_iota(jnp.int32, (8, hc), 0)
    stats = jnp.where(rid == 0, psum, jnp.where(rid == 1, psq, 0.0))  # [8, hc]
    stats_ref[...] = stats[None]                         # [1, 8, hc]


def _norm_mish_kernel(x_ref, a_ref, b_ref, o_ref):
    """GraphNorm with host-prefolded affine (y = a*x + b) followed by Mish."""
    y = x_ref[...] * a_ref[...] + b_ref[...]
    o_ref[...] = _fast_mish(y).astype(o_ref.dtype)


# ------------------------------------------------------------------------------- wrapper
def edge_index_to_mask(edge_index, num_nodes):
    """Dense int8 mask[i, j] = 1 iff there is an edge j -> i (edge_index[0]=src, [1]=dst)."""
    src, dst = edge_index[0], edge_index[1]
    mask = jnp.zeros((num_nodes, num_nodes), jnp.int8)
    return mask.at[dst, src].set(1)


def gcn_encoder_forward(x, adj_mask, params, *, tile_rows=256):
    """x: [N, f_in] node features, adj_mask: [N, N] int8 edge mask -> [N, heads*out_channels]."""
    heads = params["heads"]
    hc = params["gn_weight"].shape[-1]
    head_dim = hc // heads
    n, f_in = x.shape
    out_dtype = x.dtype

    # >= 2 row tiles when possible so the "parallel" axis can split across v7x's 2 TCs.
    if n <= tile_rows and tile_rows > 128:
        tile_rows = 128
    n_tiles = pl.cdiv(n, tile_rows)
    n_pad = n_tiles * tile_rows
    if n_pad != n:
        x = jnp.pad(x, ((0, n_pad - n), (0, 0)))
        adj_mask = jnp.pad(adj_mask, ((0, n_pad - n), (0, n_pad - n)))

    # bf16 on the MXU paths (f32 accumulation in-kernel); 1/sqrt(C) folded into Wq / bq.
    scale = 1.0 / math.sqrt(head_dim)
    w = params["w_all"].astype(jnp.float32)              # [f_in, 4*hc]  Q|K|V|skip
    b = params["b_all"].astype(jnp.float32)              # [1, 4*hc]
    w_kv = jnp.concatenate([w[:, hc:2 * hc], w[:, 2 * hc:3 * hc]], axis=1).astype(jnp.bfloat16)
    b_kv = jnp.concatenate([b[:, hc:2 * hc], b[:, 2 * hc:3 * hc]], axis=1)
    w_qs = jnp.concatenate([w[:, :hc] * scale, w[:, 3 * hc:]], axis=1).astype(jnp.bfloat16)
    b_qs = jnp.concatenate([b[:, :hc] * scale, b[:, 3 * hc:]], axis=1)
    x16 = x.astype(jnp.bfloat16)

    cparams = pltpu.CompilerParams(dimension_semantics=("parallel",),
                                   vmem_limit_bytes=64 * 1024 * 1024)
    row_tile = lambda i: (i, 0)
    full = lambda i: (0, 0)

    # ---- pass 1: K^T / V projection ------------------------------------------------------
    kt, v = pl.pallas_call(
        functools.partial(_kv_proj_kernel, hc=hc),
        grid=(n_tiles,),
        in_specs=[
            pl.BlockSpec((tile_rows, f_in), row_tile),
            pl.BlockSpec((f_in, 2 * hc), full),
            pl.BlockSpec((1, 2 * hc), full),
        ],
        out_specs=[
            pl.BlockSpec((hc, tile_rows), lambda i: (0, i)),   # K^T column tiles
            pl.BlockSpec((tile_rows, hc), row_tile),
        ],
        out_shape=(
            jax.ShapeDtypeStruct((hc, n_pad), jnp.bfloat16),
            jax.ShapeDtypeStruct((n_pad, hc), jnp.bfloat16),
        ),
        compiler_params=cparams,
    )(x16, w_kv, b_kv)

    # ---- pass 2: fused Q/skip projection + masked attention + GraphNorm partials ---------
    # TODO(synk): for very large graphs on v7x (64 MiB VMEM), single-buffer the revisited
    #             K^T/V blocks (pipeline_mode=pl.Buffered(1)) and/or tile the source axis
    #             with an online-softmax inner loop.
    attn, stats = pl.pallas_call(
        functools.partial(_attn_kernel, heads=heads, head_dim=head_dim,
                          n_valid=n, tile_rows=tile_rows),
        grid=(n_tiles,),
        in_specs=[
            pl.BlockSpec((tile_rows, f_in), row_tile),      # x row tile
            pl.BlockSpec((f_in, 2 * hc), full),             # Wq|Wskip (revisited)
            pl.BlockSpec((1, 2 * hc), full),                # bq|bskip
            pl.BlockSpec((hc, n_pad), full),                # K^T (resident, revisited)
            pl.BlockSpec((n_pad, hc), full),                # V   (resident, revisited)
            pl.BlockSpec((tile_rows, n_pad), row_tile),     # int8 mask rows (streaming)
        ],
        out_specs=[
            pl.BlockSpec((tile_rows, hc), row_tile),
            pl.BlockSpec((1, 8, hc), lambda i: (i, 0, 0)),  # per-tile sum / sumsq
        ],
        out_shape=(
            jax.ShapeDtypeStruct((n_pad, hc), jnp.float32),
            jax.ShapeDtypeStruct((n_tiles, 8, hc), jnp.float32),
        ),
        compiler_params=cparams,
    )(x16, w_qs, b_qs, kt, v, adj_mask)

    # ---- finalize GraphNorm stats (tiny [n_tiles, hc] XLA reduce) + pre-fold affine ------
    inv_n = 1.0 / n
    mean = jnp.sum(stats[:, 0:1, :], axis=0) * inv_n        # [1, hc]
    ex2 = jnp.sum(stats[:, 1:2, :], axis=0) * inv_n         # [1, hc]
    ms = params["gn_mean_scale"].astype(jnp.float32)
    mm = mean * ms
    var = ex2 - 2.0 * mm * mean + mm * mm                   # E[(x - ms*mean)^2]
    inv_std = jax.lax.rsqrt(var + 1e-5)
    a = params["gn_weight"].astype(jnp.float32) * inv_std   # y = a*x + b_aff
    b_aff = params["gn_bias"].astype(jnp.float32) - a * mm

    # ---- pass 3: GraphNorm affine + Mish --------------------------------------------------
    out = pl.pallas_call(
        _norm_mish_kernel,
        grid=(n_tiles,),
        in_specs=[
            pl.BlockSpec((tile_rows, hc), row_tile),
            pl.BlockSpec((1, hc), full),
            pl.BlockSpec((1, hc), full),
        ],
        out_specs=pl.BlockSpec((tile_rows, hc), row_tile),
        out_shape=jax.ShapeDtypeStruct((n_pad, hc), out_dtype),
        compiler_params=cparams,
    )(attn, a, b_aff)

    return out[:n]


# ------------------------------------------------------------------------------ params
def init_params(key, in_channels, out_channels, heads=4, dtype=jnp.float32):
    """Deterministic init for TransformerConv (Wq/Wk/Wv/Wskip + biases) and GraphNorm."""
    hc = heads * out_channels
    keys = jax.random.split(key, 11)
    bound = in_channels ** -0.5

    def lin(kw, kb):
        w = jax.random.uniform(kw, (in_channels, hc), dtype, -bound, bound)
        b = jax.random.uniform(kb, (1, hc), dtype, -bound, bound)
        return w, b

    wq, bq = lin(keys[0], keys[1])
    wk, bk = lin(keys[2], keys[3])
    wv, bv = lin(keys[4], keys[5])
    ws, bs = lin(keys[6], keys[7])
    return {
        "heads": heads,
        "w_all": jnp.concatenate([wq, wk, wv, ws], axis=1),   # [f_in, 4*H*C], order Q|K|V|skip
        "b_all": jnp.concatenate([bq, bk, bv, bs], axis=1),   # [1, 4*H*C]
        "gn_weight": 1.0 + 0.1 * jax.random.normal(keys[8], (1, hc), dtype),
        "gn_bias": 0.05 * jax.random.normal(keys[9], (1, hc), dtype),
        "gn_mean_scale": 1.0 + 0.1 * jax.random.normal(keys[10], (1, hc), dtype),
    }


class GCNEncoderMultiInputPallas:
    """JAX/Pallas port of GCNEncoder_Multiinput: one TransformerConv(heads=4)+GraphNorm+Mish
    parameter set per graph show_index.  (The unused `convl2` of the original is omitted.)"""

    def __init__(self, out_channels, graph_in_channels, key, heads=4):
        self.params = {}
        for show_index, in_ch in graph_in_channels.items():
            key, sub = jax.random.split(key)
            self.params[show_index] = init_params(sub, in_ch, out_channels, heads)

    def __call__(self, x, edge_index, show_index, *, tile_rows=256):
        mask = edge_index_to_mask(edge_index, x.shape[0])
        return gcn_encoder_forward(x, mask, self.params[show_index], tile_rows=tile_rows)


# ---------------------------------------------------------------------------- reference
def _reference_forward(x, adj_mask, params):
    """Pure-JAX f32 reference with exact Mish / softmax for correctness checking."""
    heads = params["heads"]
    hc = params["gn_weight"].shape[-1]
    c = hc // heads
    n = x.shape[0]
    proj = x @ params["w_all"] + params["b_all"]
    q, k, v, s = (proj[:, i * hc:(i + 1) * hc] for i in range(4))
    qh = q.reshape(n, heads, c)
    kh = k.reshape(n, heads, c)
    vh = v.reshape(n, heads, c)
    scores = jnp.einsum("ihc,jhc->hij", qh, kh) / math.sqrt(c)
    edge = (adj_mask > 0)[None]
    sc = jnp.where(edge, scores, -1e30)
    m = sc.max(axis=-1, keepdims=True)
    p = jnp.where(edge, jnp.exp(sc - m), 0.0)
    den = p.sum(axis=-1, keepdims=True)
    alpha = jnp.where(den > 0.0, p / jnp.maximum(den, 1e-30), 0.0)
    conv = jnp.einsum("hij,jhc->ihc", alpha, vh).reshape(n, hc) + s
    mean = conv.mean(axis=0, keepdims=True)
    centered = conv - mean * params["gn_mean_scale"]
    var = (centered * centered).mean(axis=0, keepdims=True)
    y = params["gn_weight"] * centered / jnp.sqrt(var + 1e-5) + params["gn_bias"]
    return y * jnp.tanh(jax.nn.softplus(y))


if __name__ == "__main__":
    key = jax.random.PRNGKey(0)
    out_channels, heads = 32, 4                      # TransformerConv(in, 32, heads=4) -> 128 feats
    # show_index -> (num_nodes, in_channels, num_edges); g1 exercises the padding path.
    graphs = {"g0": (512, 64, 4096), "g1": (384, 48, 2048)}

    enc = GCNEncoderMultiInputPallas(
        out_channels, {k: v[1] for k, v in graphs.items()}, jax.random.PRNGKey(1), heads=heads)

    for show_index, (n_nodes, in_ch, n_edges) in graphs.items():
        key, kx, ke = jax.random.split(key, 3)
        x = jax.random.normal(kx, (n_nodes, in_ch), jnp.float32)
        edge_index = jax.random.randint(ke, (2, n_edges), 0, n_nodes, jnp.int32)

        out = enc(x, edge_index, show_index)
        out = jax.block_until_ready(out)

        mask = edge_index_to_mask(edge_index, n_nodes)
        ref = _reference_forward(x, mask.astype(jnp.float32), enc.params[show_index])

        assert out.shape == (n_nodes, heads * out_channels)
        assert bool(jnp.all(jnp.isfinite(out))), f"{show_index}: non-finite output"
        err = float(jnp.max(jnp.abs(out - ref)))
        # Tolerance relaxed vs the f32 baseline: the kernel runs the MXU paths in bf16
        # (per the perf review) while the reference is exact f32; outputs are O(1) after
        # GraphNorm, so 5e-2 max-abs comfortably covers the bf16 + approx-reciprocal budget.
        assert err < 5e-2, f"{show_index}: max abs err {err}"

    print("KERNEL_OK")
</pallas_src>

<mosaic_0001>
module attributes {stable_mosaic.version = 11 : i64} {
  func.func @_kv_proj_kernel(%arg0: i32, %arg1: memref<256x64xbf16, #tpu.memory_space<vmem>>, %arg2: memref<64x256xbf16, #tpu.memory_space<vmem>>, %arg3: memref<1x256xf32, #tpu.memory_space<vmem>>, %arg4: memref<128x256xbf16, #tpu.memory_space<vmem>>, %arg5: memref<256x128xbf16, #tpu.memory_space<vmem>>) attributes {dimension_semantics = [#tpu.dimension_semantics<parallel>], iteration_bounds = array<i64: 2>, scalar_prefetch = 0 : i64, scratch_operands = 0 : i64, tpu.core_type = #tpu.core_type<tc>, window_params = [{transform_indices = @transform_0, window_bounds = array<i64: 256, 64>}, {pipeline_mode = #tpu.pipeline_mode<synchronous>, transform_indices = @transform_1, window_bounds = array<i64: 64, 256>}, {pipeline_mode = #tpu.pipeline_mode<synchronous>, transform_indices = @transform_2, window_bounds = array<i64: 1, 256>}, {transform_indices = @transform_3, window_bounds = array<i64: 128, 256>}, {transform_indices = @transform_4, window_bounds = array<i64: 256, 128>}]} {
    %c0 = arith.constant 0 : index
    %c0_0 = arith.constant 0 : index
    %0 = vector.load %arg1[%c0, %c0_0] : memref<256x64xbf16, #tpu.memory_space<vmem>>, vector<256x64xbf16>
    %c0_1 = arith.constant 0 : index
    %c0_2 = arith.constant 0 : index
    %1 = vector.load %arg2[%c0_1, %c0_2] : memref<64x256xbf16, #tpu.memory_space<vmem>>, vector<64x256xbf16>
    %cst = arith.constant dense<0.000000e+00> : vector<256x256xf32>
    %2 = tpu.matmul %0, %1, %cst {dimension_numbers = #tpu.dot_dimension_numbers<[1], [0], [0], [1], [0, 0, 1, 1], [], []>} : vector<256x64xbf16>, vector<64x256xbf16>, vector<256x256xf32> -> vector<256x256xf32>
    %c0_3 = arith.constant 0 : index
    %c0_4 = arith.constant 0 : index
    %3 = vector.load %arg3[%c0_3, %c0_4] : memref<1x256xf32, #tpu.memory_space<vmem>>, vector<1x256xf32>
    %4 = vector.broadcast %3 : vector<1x256xf32> to vector<256x256xf32>
    %5 = arith.addf %2, %4 : vector<256x256xf32>
    %6 = vector.extract_strided_slice %5 {offsets = [0, 0], sizes = [256, 128], strides = [1, 1]} : vector<256x256xf32> to vector<256x128xf32>
    %7 = tpu.transpose %6, [1, 0] : vector<256x128xf32> -> vector<128x256xf32>
    %8 = arith.truncf %7 : vector<128x256xf32> to vector<128x256xbf16>
    %c0_5 = arith.constant 0 : index
    %c0_6 = arith.constant 0 : index
    %9 = vector.load %arg4[%c0_5, %c0_6] : memref<128x256xbf16, #tpu.memory_space<vmem>>, vector<128x256xbf16>
    tpu.vector_store %arg4[%c0_5, %c0_6], %8 {strides = array<i32>} : memref<128x256xbf16, #tpu.memory_space<vmem>>, vector<128x256xbf16>,
    %10 = vector.extract_strided_slice %5 {offsets = [0, 128], sizes = [256, 128], strides = [1, 1]} : vector<256x256xf32> to vector<256x128xf32>
    %11 = arith.truncf %10 : vector<256x128xf32> to vector<256x128xbf16>
    %c0_7 = arith.constant 0 : index
    %c0_8 = arith.constant 0 : index
    %12 = vector.load %arg5[%c0_7, %c0_8] : memref<256x128xbf16, #tpu.memory_space<vmem>>, vector<256x128xbf16>
    tpu.vector_store %arg5[%c0_7, %c0_8], %11 {strides = array<i32>} : memref<256x128xbf16, #tpu.memory_space<vmem>>, vector<256x128xbf16>,
    return
  }
  func.func @transform_0(%arg0: i32) -> (i32, i32) {
    %c0_i32 = arith.constant 0 : i32
    %c0_i32_0 = arith.constant 0 : i32
    return %arg0, %c0_i32 : i32, i32
  }
  func.func @transform_1(%arg0: i32) -> (i32, i32) {
    %c0_i32 = arith.constant 0 : i32
    %c0_i32_0 = arith.constant 0 : i32
    %c0_i32_1 = arith.constant 0 : i32
    return %c0_i32, %c0_i32_0 : i32, i32
  }
  func.func @transform_2(%arg0: i32) -> (i32, i32) {
    %c0_i32 = arith.constant 0 : i32
    %c0_i32_0 = arith.constant 0 : i32
    %c0_i32_1 = arith.constant 0 : i32
    return %c0_i32, %c0_i32_0 : i32, i32
  }
  func.func @transform_3(%arg0: i32) -> (i32, i32) {
    %c0_i32 = arith.constant 0 : i32
    %c0_i32_0 = arith.constant 0 : i32
    return %c0_i32, %arg0 : i32, i32
  }
  func.func @transform_4(%arg0: i32) -> (i32, i32) {
    %c0_i32 = arith.constant 0 : i32
    %c0_i32_0 = arith.constant 0 : i32
    return %arg0, %c0_i32 : i32, i32
  }
}

</mosaic_0001>

<llo_original>
// kernel: tpu_custom_call.1
$region0: #{tpu_custom_call.1}
  #allocation0 [shape = 'u32[]', space=smem, size = 0x4, offset = 0x4, fixed_abs, tag = 'smem constant byte address 0x4 - core index']
  #allocation1 [shape = 'u32[144,128]{1,0:T(1,128)}', space=vmem, size = 0x12000, scoped, tag = 'internal scratch']
  %s0 = inlined_call_operand.vmem [shape: bf16[512,64], index: 0, kind: input, shape index: {}]
  %s1 = inlined_call_operand.vmem [shape: bf16[64,256], index: 1, kind: input, shape index: {}]
  %s2 = inlined_call_operand.vmem [shape: f32[1,256], index: 2, kind: input, shape index: {}]
  %s3 = inlined_call_operand.hbm [shape: bf16[128,512], index: 3, kind: output, shape index: {0}]
  %s4 = inlined_call_operand.hbm [shape: bf16[512,128], index: 4, kind: output, shape index: {1}]
  %5 = xla_tuple %s3, %s4
  %s6 = sld [smem:[#allocation0]]
  $region53: #{tpu_custom_call.1} parent=0
    _
  %s8 = ssub.s32 1, %s6
  %s9 = scalar_select 0, %s8, %s6
  $region1: #{tpu_custom_call.1} parent=0
    #allocation2 [shape = 'u8[131072]{0}', space=vmem, size = 0x20000, scoped, tag = 'output window, operand 0']
    #allocation3 [shape = 's32[2]{0}', space=sflag, size = 0x8, scoped, tag = 'scoped memory for tpu_custom_call.1']
    #allocation4 [shape = 'u8[131072]{0}', space=vmem, size = 0x20000, scoped, tag = 'output window, operand 1']
    #allocation5 [shape = 's32[2]{0}', space=sflag, size = 0x8, scoped, tag = 'scoped memory for tpu_custom_call.1']
    %10 = vsyncpa [#allocation3], 0
    %s11 = scalar_lea.sflag [#allocation3], 1
    %12 = vsyncpa %s11, 0
    %13 = vsyncpa [#allocation5], 0
    %s14 = scalar_lea.sflag [#allocation5], 1
    %15 = vsyncpa %s14, 0
    loop: start=0, step=1, limit=4
    $region2: #{tpu_custom_call.1} parent=1 // loop_pre_header
      _
    $region3: #{tpu_custom_call.1} parent=1 // loop_header
      %s17 = sphi 0, %s21
      %p18 = scmp.ge.s32.totalorder %s17, 4
      %s27 = sphi 0, %s29
      %s30 = sphi 0, %s27
      %s31 = sphi 0, %s30
      %s47 = sphi 0, %s31
      %s51 = sphi 0, %s51
      %s53 = sphi 0, %s51
      %s54 = sphi 0, %s53
      %s68 = sphi 0, %s54
      %s72 = sphi 0, %s72
      %s74 = sphi 0, %s72
      %s75 = sphi 0, %s74
      %s89 = sphi 0, %s75
      %s95 = sphi 0, %s97
      %s98 = sphi 0, %s95
      %s99 = sphi 0, %s98
      %s115 = sphi 0, %s99
      %s121 = sphi 0, %s123
      %s124 = sphi 0, %s121
      %s125 = sphi 0, %s124
      %s141 = sphi 0, %s125
    $region4: #{tpu_custom_call.1} parent=1 // loop_header_branch
      %20 = sbr.rel (%p18) target = $region8
    $region5: #{tpu_custom_call.1} parent=1 // loop_body
      %s22 = ssub.s32 %s17, 1
      %s23 = ssub.s32 %s17, 2
      %s24 = sadd.s32 %s17, 1
      %s25 = ssub.s32 %s17, %s24
      %p26 = scmp.eq.s32.totalorder %s25, 0
      %s28 = sadd.s32 %s27, 1
      %s29 = scalar_select %p26, %s27, %s28
      %p32 = pneg %p26
      %p33 = scmp.eq.s32.totalorder %s17, 1
      %p34 = por %p32, %p33
      %p35 = scmp.ne.s32.totalorder %s27, %s30
      %p36 = scmp.eq.s32.totalorder %s17, 0
      %p37 = por %p35, %p36
      %p38 = scmp.ne.s32.totalorder %s27, %s30
      %p39 = scmp.eq.s32.totalorder %s22, 1
      %p40 = por %p38, %p39
      %p41 = scmp.ne.s32.totalorder %s30, %s31
      %p42 = scmp.eq.s32.totalorder %s22, 0
      %p43 = por %p41, %p42
      %p44 = scmp.ne.s32.totalorder %s30, %s31
      %p45 = scmp.eq.s32.totalorder %s23, 1
      %p46 = por %p44, %p45
      %p48 = scmp.ne.s32.totalorder %s31, %s47
      %p49 = scmp.eq.s32.totalorder %s23, 0
      %p50 = por %p48, %p49
      %s52 = sadd.s32 %s51, 1
      %p55 = scmp.eq.s32.totalorder %s17, 1
      %p56 = scmp.ne.s32.totalorder %s51, %s53
      %p57 = scmp.eq.s32.totalorder %s17, 0
      %p58 = por %p56, %p57
      %p59 = scmp.ne.s32.totalorder %s51, %s53
      %p60 = scmp.eq.s32.totalorder %s22, 1
      %p61 = por %p59, %p60
      %p62 = scmp.ne.s32.totalorder %s53, %s54
      %p63 = scmp.eq.s32.totalorder %s22, 0
      %p64 = por %p62, %p63
      %p65 = scmp.ne.s32.totalorder %s53, %s54
      %p66 = scmp.eq.s32.totalorder %s23, 1
      %p67 = por %p65, %p66
      %p69 = scmp.ne.s32.totalorder %s54, %s68
      %p70 = scmp.eq.s32.totalorder %s23, 0
      %p71 = por %p69, %p70
      %s73 = sadd.s32 %s72, 1
      %p76 = scmp.eq.s32.totalorder %s17, 1
      %p77 = scmp.ne.s32.totalorder %s72, %s74
      %p78 = scmp.eq.s32.totalorder %s17, 0
      %p79 = por %p77, %p78
      %p80 = scmp.ne.s32.totalorder %s72, %s74
      %p81 = scmp.eq.s32.totalorder %s22, 1
      %p82 = por %p80, %p81
      %p83 = scmp.ne.s32.totalorder %s74, %s75
      %p84 = scmp.eq.s32.totalorder %s22, 0
      %p85 = por %p83, %p84
      %p86 = scmp.ne.s32.totalorder %s74, %s75
      %p87 = scmp.eq.s32.totalorder %s23, 1
      %p88 = por %p86, %p87
      %p90 = scmp.ne.s32.totalorder %s75, %s89
      %p91 = scmp.eq.s32.totalorder %s23, 0
      %p92 = por %p90, %p91
      %s93 = ssub.s32 %s17, %s24
      %p94 = scmp.eq.s32.totalorder %s93, 0
      %s96 = sadd.s32 %s95, 1
      %s97 = scalar_select %p94, %s95, %s96
      %p100 = pneg %p94
      %p101 = scmp.eq.s32.totalorder %s17, 1
      %p102 = por %p100, %p101
      %p103 = scmp.ne.s32.totalorder %s95, %s98
      %p104 = scmp.eq.s32.totalorder %s17, 0
      %p105 = por %p103, %p104
      %p106 = scmp.ne.s32.totalorder %s95, %s98
      %p107 = scmp.eq.s32.totalorder %s22, 1
      %p108 = por %p106, %p107
      %p109 = scmp.ne.s32.totalorder %s98, %s99
      %p110 = scmp.eq.s32.totalorder %s22, 0
      %p111 = por %p109, %p110
      %p112 = scmp.ne.s32.totalorder %s98, %s99
      %p113 = scmp.eq.s32.totalorder %s23, 1
      %p114 = por %p112, %p113
      %p116 = scmp.ne.s32.totalorder %s99, %s115
      %p117 = scmp.eq.s32.totalorder %s23, 0
      %p118 = por %p116, %p117
      %s119 = ssub.s32 %s17, %s24
      %p120 = scmp.eq.s32.totalorder %s119, 0
      %s122 = sadd.s32 %s121, 1
      %s123 = scalar_select %p120, %s121, %s122
      %p126 = pneg %p120
      %p127 = scmp.eq.s32.totalorder %s17, 1
      %p128 = por %p126, %p127
      %p129 = scmp.ne.s32.totalorder %s121, %s124
      %p130 = scmp.eq.s32.totalorder %s17, 0
      %p131 = por %p129, %p130
      %p132 = scmp.ne.s32.totalorder %s121, %s124
      %p133 = scmp.eq.s32.totalorder %s22, 1
      %p134 = por %p132, %p133
      %p135 = scmp.ne.s32.totalorder %s124, %s125
      %p136 = scmp.eq.s32.totalorder %s22, 0
      %p137 = por %p135, %p136
      %p138 = scmp.ne.s32.totalorder %s124, %s125
      %p139 = scmp.eq.s32.totalorder %s23, 1
      %p140 = por %p138, %p139
      %p142 = scmp.ne.s32.totalorder %s125, %s141
      %p143 = scmp.eq.s32.totalorder %s23, 0
      %p144 = por %p142, %p143
      %p145 = scmp.le.s32.totalorder 1, %s17
      %p146 = scmp.lt.s32.totalorder %s17, 3
      %p147 = pnand %p145, %p146
      %p148 = pneg %p147
      // Predicated region
      $region9: #{tpu_custom_call.1} parent=5 // pred_check
        _
      $region10: #{tpu_custom_call.1} parent=5 // pred_check_branch
        %150 = sbr.rel (%p147) target = $region12
      $region11: #{tpu_custom_call.1} parent=5 // pred_region
        %s151 = ssub.s32 %s17, 1
        // Predicated region
        $region13: #{tpu_custom_call.1} parent=11 // pred_check
          %p152 = pneg %p64
        $region14: #{tpu_custom_call.1} parent=11 // pred_check_branch
          %154 = sbr.rel (%p152) target = $region16
        $region15: #{tpu_custom_call.1} parent=11 // pred_region
          _
        $region16: #{tpu_custom_call.1} parent=11 // pred_fallthru
          _
        // Predicated region
        $region17: #{tpu_custom_call.1} parent=11 // pred_check
          %p155 = pneg %p85
        $region18: #{tpu_custom_call.1} parent=11 // pred_check_branch
          %157 = sbr.rel (%p155) target = $region20
        $region19: #{tpu_custom_call.1} parent=11 // pred_region
          _
        $region20: #{tpu_custom_call.1} parent=11 // pred_fallthru
          _
      $region12: #{tpu_custom_call.1} parent=5 // pred_fallthru
        _
      %p158 = scmp.lt.s32.totalorder %s17, 2
      // Predicated region
      $region21: #{tpu_custom_call.1} parent=5 // pred_check
        %p159 = pneg %p158
      $region22: #{tpu_custom_call.1} parent=5 // pred_check_branch
        %161 = sbr.rel (%p159) target = $region24
      $region23: #{tpu_custom_call.1} parent=5 // pred_region
        // Predicated region
        $region25: #{tpu_custom_call.1} parent=23 // pred_check
          %p162 = pneg %p37
        $region26: #{tpu_custom_call.1} parent=23 // pred_check_branch
          %164 = sbr.rel (%p162) target = $region28
        $region27: #{tpu_custom_call.1} parent=23 // pred_region
          %s165 = smul.u32 32, %s17
          %p166 = scmp.lt.s32.totalorder %s165, 63
          %s167 = scalar_select %p166, %s165, 63
          %s168 = smul.addr %s167, 4
          %s169 = scalar_lea.vmem %s0, %s168
          %s170 = smul.u32 32, %s17
        $region28: #{tpu_custom_call.1} parent=23 // pred_fallthru
          _
      $region24: #{tpu_custom_call.1} parent=5 // pred_fallthru
        _
      %p171 = scmp.le.s32.totalorder 1, %s17
      %p172 = scmp.lt.s32.totalorder %s17, 3
      %p173 = pnand %p171, %p172
      %p174 = pneg %p173
      // Predicated region
      $region29: #{tpu_custom_call.1} parent=5 // pred_check
        _
      $region30: #{tpu_custom_call.1} parent=5 // pred_check_branch
        %176 = sbr.rel (%p173) target = $region32
      $region31: #{tpu_custom_call.1} parent=5 // pred_region
        %s177 = ssub.s32 %s17, 1
        %s178 = smul.u32 32, %s22
        %p179 = scmp.lt.s32.totalorder %s178, 63
        %s180 = scalar_select %p179, %s178, 63
        %s181 = smul.addr %s180, 4
        %s182 = scalar_lea.vmem %s0, %s181
        %p183 = pneg %p43
        %p184 = pneg %p40
        %p185 = pneg %p64
        %p186 = pneg %p61
        %p187 = pneg %p85
        %p188 = pneg %p82
        %p189 = pneg %p111
        %p190 = pneg %p108
        %s191 = sand.u32 %s98, 1
        %s192 = scalar_lea.sflag [#allocation3], %s191
        %s193 = sand.u32 %s98, 1
        %s194 = smul.addr %s193, 128
        %s195 = scalar_lea.vmem [#allocation2], %s194
        %p196 = pneg %p137
        %p197 = pneg %p134
        %s198 = sand.u32 %s124, 1
        %s199 = scalar_lea.sflag [#allocation5], %s198
        %s200 = sand.u32 %s124, 1
        %s201 = smul.addr %s200, 128
        %s202 = scalar_lea.vmem [#allocation4], %s201
        %s203 = smul.u32 32, %s22
        %p204 = scmp.lt.s32.totalorder %s203, 63
        %s205 = scalar_select %p204, %s203, 63
        %s206 = smul.addr %s205, 4
        %s207 = scalar_lea.vmem %s0, %s206
        %s208 = smul.u32 32, %s22
        %s209 = smul.u32 2, %s22
        %s210 = smul.u32 32, %s22
        %v212 = vld [vmem:[%s207] sm:$0xf]
        %v213 = vld [vmem:[%s207 + $0x4] sm:$0xf]
        %v214 = vld [vmem:[%s207 + $0x8] sm:$0xf]
        %v215 = vld [vmem:[%s207 + $0xc] sm:$0xf]
        %v216 = vld [vmem:[%s207 + $0x10] sm:$0xf]
        %v217 = vld [vmem:[%s207 + $0x14] sm:$0xf]
        %v218 = vld [vmem:[%s207 + $0x18] sm:$0xf]
        %v219 = vld [vmem:[%s207 + $0x1c] sm:$0xf]
        %v220 = vld [vmem:[%s207 + $0x20] sm:$0xf]
        %v221 = vld [vmem:[%s207 + $0x24] sm:$0xf]
        %v222 = vld [vmem:[%s207 + $0x28] sm:$0xf]
        %v223 = vld [vmem:[%s207 + $0x2c] sm:$0xf]
        %v224 = vld [vmem:[%s207 + $0x30] sm:$0xf]
        %v225 = vld [vmem:[%s207 + $0x34] sm:$0xf]
        %v226 = vld [vmem:[%s207 + $0x38] sm:$0xf]
        %v227 = vld [vmem:[%s207 + $0x3c] sm:$0xf]
        %v228 = vld [vmem:[%s207 + $0x40] sm:$0xf]
        %v229 = vld [vmem:[%s207 + $0x44] sm:$0xf]
        %v230 = vld [vmem:[%s207 + $0x48] sm:$0xf]
        %v231 = vld [vmem:[%s207 + $0x4c] sm:$0xf]
        %v232 = vld [vmem:[%s207 + $0x50] sm:$0xf]
        %v233 = vld [vmem:[%s207 + $0x54] sm:$0xf]
        %v234 = vld [vmem:[%s207 + $0x58] sm:$0xf]
        %v235 = vld [vmem:[%s207 + $0x5c] sm:$0xf]
        %v236 = vld [vmem:[%s207 + $0x60] sm:$0xf]
        %v237 = vld [vmem:[%s207 + $0x64] sm:$0xf]
        %v238 = vld [vmem:[%s207 + $0x68] sm:$0xf]
        %v239 = vld [vmem:[%s207 + $0x6c] sm:$0xf]
        %v240 = vld [vmem:[%s207 + $0x70] sm:$0xf]
        %v241 = vld [vmem:[%s207 + $0x74] sm:$0xf]
        %v242 = vld [vmem:[%s207 + $0x78] sm:$0xf]
        %v243 = vld [vmem:[%s207 + $0x7c] sm:$0xf]
        %v244 = vld [vmem:[%s1] sm:$0xff]
        %v245 = vld [vmem:[%s1 + $0x8] sm:$0xff]
        %v246 = vld [vmem:[%s1 + $0x10] sm:$0xff]
        %v247 = vld [vmem:[%s1 + $0x18] sm:$0xff]
        %v248 = vld [vmem:[%s1 + $0x20] sm:$0xff]
        %v249 = vld [vmem:[%s1 + $0x28] sm:$0xff]
        %v250 = vld [vmem:[%s1 + $0x30] sm:$0xff]
        %v251 = vld [vmem:[%s1 + $0x38] sm:$0xff]
        %v252 = vld [vmem:[%s2] sm:$0x3]
        %v254 = vlaneseq
        %v255 = vshrl.u32 %v254, 7
        %v256 = vsub.s32 0, %v255
        %v257 = vrot.slane %v252, %v256
        %v258 = vlaneseq
        %v259 = vshrl.u32 %v258, 7
        %v260 = vsub.s32 1, %v259
        %v261 = vrot.slane %v252, %v260
        %v296 = vunpack.c.l.b16 %v212
        %v297 = vunpack.c.l.b16 %v213
        %v298 = vunpack.c.l.b16 %v214
        %v299 = vunpack.c.l.b16 %v215
        %v300 = vunpack.c.l.b16 %v216
        %v301 = vunpack.c.l.b16 %v217
        %v302 = vunpack.c.l.b16 %v218
        %v303 = vunpack.c.l.b16 %v219
        %v304 = vunpack.c.l.b16 %v220
        %v305 = vunpack.c.l.b16 %v221
        %v306 = vunpack.c.l.b16 %v222
        %v307 = vunpack.c.l.b16 %v223
        %v308 = vunpack.c.l.b16 %v224
        %v309 = vunpack.c.l.b16 %v225
        %v310 = vunpack.c.l.b16 %v226
        %v311 = vunpack.c.l.b16 %v227
        %v312 = vunpack.c.l.b16 %v228
        %v313 = vunpack.c.l.b16 %v229
        %v314 = vunpack.c.l.b16 %v230
        %v315 = vunpack.c.l.b16 %v231
        %v316 = vunpack.c.l.b16 %v232
        %v317 = vunpack.c.l.b16 %v233
        %v318 = vunpack.c.l.b16 %v234
        %v319 = vunpack.c.l.b16 %v235
        %v320 = vunpack.c.l.b16 %v236
        %v321 = vunpack.c.l.b16 %v237
        %v322 = vunpack.c.l.b16 %v238
        %v323 = vunpack.c.l.b16 %v239
        %v324 = vunpack.c.l.b16 %v240
        %v325 = vunpack.c.l.b16 %v241
        %v326 = vunpack.c.l.b16 %v242
        %v327 = vunpack.c.l.b16 %v243
        %v328 = vpack.c.b16 %v297, %v296
        %v329 = vpack.c.b16 %v299, %v298
        %v330 = vpack.c.b16 %v301, %v300
        %v331 = vpack.c.b16 %v303, %v302
        %v332 = vpack.c.b16 %v305, %v304
        %v333 = vpack.c.b16 %v307, %v306
        %v334 = vpack.c.b16 %v309, %v308
        %v335 = vpack.c.b16 %v311, %v310
        %v336 = vpack.c.b16 %v313, %v312
        %v337 = vpack.c.b16 %v315, %v314
        %v338 = vpack.c.b16 %v317, %v316
        %v339 = vpack.c.b16 %v319, %v318
        %v340 = vpack.c.b16 %v321, %v320
        %v341 = vpack.c.b16 %v323, %v322
        %v342 = vpack.c.b16 %v325, %v324
        %v343 = vpack.c.b16 %v327, %v326
        %v352 = vunpack.c.l.b16 %v244
        %v353 = vunpack.c.h.b16 %v244
        %v354 = vunpack.c.l.b16 %v245
        %v355 = vunpack.c.h.b16 %v245
        %v356 = vunpack.c.l.b16 %v246
        %v357 = vunpack.c.h.b16 %v246
        %v358 = vunpack.c.l.b16 %v247
        %v359 = vunpack.c.h.b16 %v247
        %v360 = vunpack.c.l.b16 %v248
        %v361 = vunpack.c.h.b16 %v248
        %v362 = vunpack.c.l.b16 %v249
        %v363 = vunpack.c.h.b16 %v249
        %v364 = vunpack.c.l.b16 %v250
        %v365 = vunpack.c.h.b16 %v250
        %v366 = vunpack.c.l.b16 %v251
        %v367 = vunpack.c.h.b16 %v251
        %v368 = vpack.c.b16 %v354, %v352
        %v369 = vpack.c.b16 %v355, %v353
        %v370 = vpack.c.b16 %v358, %v356
        %v371 = vpack.c.b16 %v359, %v357
        %v372 = vpack.c.b16 %v362, %v360
        %v373 = vpack.c.b16 %v363, %v361
        %v374 = vpack.c.b16 %v366, %v364
        %v375 = vpack.c.b16 %v367, %v365
        %vm384 = vcmask 523264
        %v386 = vsel %vm384, %v328, 0
        %v389 = vsel %vm384, %v329, 0
        %v392 = vsel %vm384, %v330, 0
        %v395 = vsel %vm384, %v331, 0
        %v398 = vsel %vm384, %v332, 0
        %v401 = vsel %vm384, %v333, 0
        %v404 = vsel %vm384, %v334, 0
        %v407 = vsel %vm384, %v335, 0
        %v410 = vsel %vm384, %v336, 0
        %v413 = vsel %vm384, %v337, 0
        %v416 = vsel %vm384, %v338, 0
        %v419 = vsel %vm384, %v339, 0
        %v422 = vsel %vm384, %v340, 0
        %v425 = vsel %vm384, %v341, 0
        %v428 = vsel %vm384, %v342, 0
        %v431 = vsel %vm384, %v343, 0
        %433 = vmatprep.subr.bf16.mxu0 0
        %434 = vmatpush1.bf16.msra.mxu0 0
        %435 = vmatprep.subr.bf16.mxu0 0
        %436 = vmatpush1.bf16.msra.mxu0 0
        %437 = vmatprep.subr.bf16.mxu0 0
        %438 = vmatpush1.bf16.msra.mxu0 0
        %439 = vmatprep.subr.bf16.mxu0 0
        %440 = vmatpush1.bf16.msra.mxu0 0
        %441 = vmatprep.subr.bf16.mxu0 %v375
        %442 = vmatpush1.bf16.msra.mxu0 %v374
        %443 = vmatprep.subr.bf16.mxu0 %v373
        %444 = vmatpush1.bf16.msra.mxu0 %v372
        %445 = vmatprep.subr.bf16.mxu0 %v371
        %446 = vmatpush1.bf16.msra.mxu0 %v370
        %447 = vmatprep.subr.bf16.mxu0 %v369
        %448 = vmatpush1.bf16.msra.mxu0 %v368
        %449 = vmatprep.subr.bf16.mxu0 0
        %450 = vmatpush2.bf16.msra.mxu0 0
        %451 = vmatprep.subr.bf16.mxu0 0
        %452 = vmatpush2.bf16.msra.mxu0 0
        %453 = vmatprep.subr.bf16.mxu0 0
        %454 = vmatpush2.bf16.msra.mxu0 0
        %455 = vmatprep.subr.bf16.mxu0 0
        %456 = vmatpush2.bf16.msra.mxu0 0
        %457 = vmatprep.subr.bf16.mxu0 0
        %458 = vmatpush2.bf16.msra.mxu0 0
        %459 = vmatprep.subr.bf16.mxu0 0
        %460 = vmatpush2.bf16.msra.mxu0 0
        %461 = vmatprep.subr.bf16.mxu0 0
        %462 = vmatpush2.bf16.msra.mxu0 0
        %463 = vmatprep.subr.bf16.mxu0 0
        %464 = vmatpush2.bf16.msra.mxu0 0
        %465 = vmatprep.mubr.bf16.mxu0 0
        %466 = vmatmul.mubr.bf16.gmra.mxu0 %v386
        %v467 = vpop.f32.mrf.mxu0
        %v468 = vadd.f32 %v257, %v467
        %v469 = vpop.f32.mrf.mxu0
        %v470 = vadd.f32 %v261, %v469
        %v471 = vpop.f32.mrf.mxu0
        %v472 = vadd.f32 %v257, %v471
        %v473 = vpop.f32.mrf.mxu0
        %v474 = vadd.f32 %v261, %v473
        %475 = vmatprep.mubr.bf16.mxu0 0
        %476 = vmatmul.mubr.bf16.gmra.mxu0 %v389
        %v477 = vpop.f32.mrf.mxu0
        %v478 = vadd.f32 %v257, %v477
        %v479 = vpop.f32.mrf.mxu0
        %v480 = vadd.f32 %v261, %v479
        %v481 = vpop.f32.mrf.mxu0
        %v482 = vadd.f32 %v257, %v481
        %v483 = vpop.f32.mrf.mxu0
        %v484 = vadd.f32 %v261, %v483
        %485 = vmatprep.mubr.bf16.mxu0 0
        %486 = vmatmul.mubr.bf16.gmra.mxu0 %v392
        %v487 = vpop.f32.mrf.mxu0
        %v488 = vadd.f32 %v257, %v487
        %v489 = vpop.f32.mrf.mxu0
        %v490 = vadd.f32 %v261, %v489
        %v491 = vpop.f32.mrf.mxu0
        %v492 = vadd.f32 %v257, %v491
        %v493 = vpop.f32.mrf.mxu0
        %v494 = vadd.f32 %v261, %v493
        %495 = vmatprep.mubr.bf16.mxu0 0
        %496 = vmatmul.mubr.bf16.gmra.mxu0 %v395
        %v497 = vpop.f32.mrf.mxu0
        %v498 = vadd.f32 %v257, %v497
        %v499 = vpop.f32.mrf.mxu0
        %v500 = vadd.f32 %v261, %v499
        %v501 = vpop.f32.mrf.mxu0
        %v502 = vadd.f32 %v257, %v501
        %v503 = vpop.f32.mrf.mxu0
        %v504 = vadd.f32 %v261, %v503
        %505 = vmatprep.mubr.bf16.mxu0 0
        %506 = vmatmul.mubr.bf16.gmra.mxu0 %v398
        %v507 = vpop.f32.mrf.mxu0
        %v508 = vadd.f32 %v257, %v507
        %v509 = vpop.f32.mrf.mxu0
        %v510 = vadd.f32 %v261, %v509
        %v511 = vpop.f32.mrf.mxu0
        %v512 = vadd.f32 %v257, %v511
        %v513 = vpop.f32.mrf.mxu0
        %v514 = vadd.f32 %v261, %v513
        %515 = vmatprep.mubr.bf16.mxu0 0
        %516 = vmatmul.mubr.bf16.gmra.mxu0 %v401
        %v517 = vpop.f32.mrf.mxu0
        %v518 = vadd.f32 %v257, %v517
        %v519 = vpop.f32.mrf.mxu0
        %v520 = vadd.f32 %v261, %v519
        %v521 = vpop.f32.mrf.mxu0
        %v522 = vadd.f32 %v257, %v521
        %v523 = vpop.f32.mrf.mxu0
        %v524 = vadd.f32 %v261, %v523
        %525 = vmatprep.mubr.bf16.mxu0 0
        %526 = vmatmul.mubr.bf16.gmra.mxu0 %v404
        %v527 = vpop.f32.mrf.mxu0
        %v528 = vadd.f32 %v257, %v527
        %v529 = vpop.f32.mrf.mxu0
        %v530 = vadd.f32 %v261, %v529
        %v531 = vpop.f32.mrf.mxu0
        %v532 = vadd.f32 %v257, %v531
        %v533 = vpop.f32.mrf.mxu0
        %v534 = vadd.f32 %v261, %v533
        %535 = vmatprep.mubr.bf16.mxu0 0
        %536 = vmatmul.mubr.bf16.gmra.mxu0 %v407
        %v537 = vpop.f32.mrf.mxu0
        %v538 = vadd.f32 %v257, %v537
        %v539 = vpop.f32.mrf.mxu0
        %v540 = vadd.f32 %v261, %v539
        %v541 = vpop.f32.mrf.mxu0
        %v542 = vadd.f32 %v257, %v541
        %v543 = vpop.f32.mrf.mxu0
        %v544 = vadd.f32 %v261, %v543
        %545 = vmatprep.mubr.bf16.mxu0 0
        %546 = vmatmul.mubr.bf16.gmra.mxu0 %v410
        %v547 = vpop.f32.mrf.mxu0
        %v548 = vadd.f32 %v257, %v547
        %v549 = vpop.f32.mrf.mxu0
        %v550 = vadd.f32 %v261, %v549
        %v551 = vpop.f32.mrf.mxu0
        %v552 = vadd.f32 %v257, %v551
        %v553 = vpop.f32.mrf.mxu0
        %v554 = vadd.f32 %v261, %v553
        %555 = vmatprep.mubr.bf16.mxu0 0
        %556 = vmatmul.mubr.bf16.gmra.mxu0 %v413
        %v557 = vpop.f32.mrf.mxu0
        %v558 = vadd.f32 %v257, %v557
        %v559 = vpop.f32.mrf.mxu0
        %v560 = vadd.f32 %v261, %v559
        %v561 = vpop.f32.mrf.mxu0
        %v562 = vadd.f32 %v257, %v561
        %v563 = vpop.f32.mrf.mxu0
        %v564 = vadd.f32 %v261, %v563
        %565 = vmatprep.mubr.bf16.mxu0 0
        %566 = vmatmul.mubr.bf16.gmra.mxu0 %v416
        %v567 = vpop.f32.mrf.mxu0
        %v568 = vadd.f32 %v257, %v567
        %v569 = vpop.f32.mrf.mxu0
        %v570 = vadd.f32 %v261, %v569
        %v571 = vpop.f32.mrf.mxu0
        %v572 = vadd.f32 %v257, %v571
        %v573 = vpop.f32.mrf.mxu0
        %v574 = vadd.f32 %v261, %v573
        %575 = vmatprep.mubr.bf16.mxu0 0
        %576 = vmatmul.mubr.bf16.gmra.mxu0 %v419
        %v577 = vpop.f32.mrf.mxu0
        %v578 = vadd.f32 %v257, %v577
        %v579 = vpop.f32.mrf.mxu0
        %v580 = vadd.f32 %v261, %v579
        %v581 = vpop.f32.mrf.mxu0
        %v582 = vadd.f32 %v257, %v581
        %v583 = vpop.f32.mrf.mxu0
        %v584 = vadd.f32 %v261, %v583
        %585 = vmatprep.mubr.bf16.mxu0 0
        %586 = vmatmul.mubr.bf16.gmra.mxu0 %v422
        %v587 = vpop.f32.mrf.mxu0
        %v588 = vadd.f32 %v257, %v587
        %v589 = vpop.f32.mrf.mxu0
        %v590 = vadd.f32 %v261, %v589
        %v591 = vpop.f32.mrf.mxu0
        %v592 = vadd.f32 %v257, %v591
        %v593 = vpop.f32.mrf.mxu0
        %v594 = vadd.f32 %v261, %v593
        %595 = vmatprep.mubr.bf16.mxu0 0
        %596 = vmatmul.mubr.bf16.gmra.mxu0 %v425
        %v597 = vpop.f32.mrf.mxu0
        %v598 = vadd.f32 %v257, %v597
        %v599 = vpop.f32.mrf.mxu0
        %v600 = vadd.f32 %v261, %v599
        %v601 = vpop.f32.mrf.mxu0
        %v602 = vadd.f32 %v257, %v601
        %v603 = vpop.f32.mrf.mxu0
        %v604 = vadd.f32 %v261, %v603
        %605 = vmatprep.mubr.bf16.mxu0 0
        %606 = vmatmul.mubr.bf16.gmra.mxu0 %v428
        %v607 = vpop.f32.mrf.mxu0
        %v608 = vadd.f32 %v257, %v607
        %v609 = vpop.f32.mrf.mxu0
        %v610 = vadd.f32 %v261, %v609
        %v611 = vpop.f32.mrf.mxu0
        %v612 = vadd.f32 %v257, %v611
        %v613 = vpop.f32.mrf.mxu0
        %v614 = vadd.f32 %v261, %v613
        %615 = vmatprep.mubr.bf16.mxu0 0
        %616 = vmatmul.mubr.bf16.gmra.mxu0 %v431
        %v617 = vpop.f32.mrf.mxu0
        %v618 = vadd.f32 %v257, %v617
        %v619 = vpop.f32.mrf.mxu0
        %v620 = vadd.f32 %v261, %v619
        %v621 = vpop.f32.mrf.mxu0
        %v622 = vadd.f32 %v257, %v621
        %v623 = vpop.f32.mrf.mxu0
        %v624 = vadd.f32 %v261, %v623
        %625 = vdwg.mxu0
        %626 = vxpose.xlu0.b32.start [1/16] %v468, 128
        %627 = vxpose.xlu0.b32.cont [2/16] %v472, 128
        %628 = vxpose.xlu0.b32.cont [3/16] %v478, 128
        %629 = vxpose.xlu0.b32.cont [4/16] %v482, 128
        %630 = vxpose.xlu0.b32.cont [5/16] %v488, 128
        %631 = vxpose.xlu0.b32.cont [6/16] %v492, 128
        %632 = vxpose.xlu0.b32.cont [7/16] %v498, 128
        %633 = vxpose.xlu0.b32.cont [8/16] %v502, 128
        %634 = vxpose.xlu0.b32.cont [9/16] %v508, 128
        %635 = vxpose.xlu0.b32.cont [10/16] %v512, 128
        %636 = vxpose.xlu0.b32.cont [11/16] %v518, 128
        %637 = vxpose.xlu0.b32.cont [12/16] %v522, 128
        %638 = vxpose.xlu0.b32.cont [13/16] %v528, 128
        %639 = vxpose.xlu0.b32.cont [14/16] %v532, 128
        %640 = vxpose.xlu0.b32.cont [15/16] %v538, 128
        %641 = vxpose.xlu0.b32.end [16/16] %v542, 128
        %v642 = vpop.trf.xlu0
        %v643 = vpop.trf.xlu0
        %v644 = vpop.trf.xlu0
        %v645 = vpop.trf.xlu0
        %v646 = vpop.trf.xlu0
        %v647 = vpop.trf.xlu0
        %v648 = vpop.trf.xlu0
        %v649 = vpop.trf.xlu0
        %v650 = vpop.trf.xlu0
        %v651 = vpop.trf.xlu0
        %v652 = vpop.trf.xlu0
        %v653 = vpop.trf.xlu0
        %v654 = vpop.trf.xlu0
        %v655 = vpop.trf.xlu0
        %v656 = vpop.trf.xlu0
        %v657 = vpop.trf.xlu0
        %658 = vxpose.xlu0.b32.start [1/16] %v548, 128
        %659 = vxpose.xlu0.b32.cont [2/16] %v552, 128
        %660 = vxpose.xlu0.b32.cont [3/16] %v558, 128
        %661 = vxpose.xlu0.b32.cont [4/16] %v562, 128
        %662 = vxpose.xlu0.b32.cont [5/16] %v568, 128
        %663 = vxpose.xlu0.b32.cont [6/16] %v572, 128
        %664 = vxpose.xlu0.b32.cont [7/16] %v578, 128
        %665 = vxpose.xlu0.b32.cont [8/16] %v582, 128
        %666 = vxpose.xlu0.b32.cont [9/16] %v588, 128
        %667 = vxpose.xlu0.b32.cont [10/16] %v592, 128
        %668 = vxpose.xlu0.b32.cont [11/16] %v598, 128
        %669 = vxpose.xlu0.b32.cont [12/16] %v602, 128
        %670 = vxpose.xlu0.b32.cont [13/16] %v608, 128
        %671 = vxpose.xlu0.b32.cont [14/16] %v612, 128
        %672 = vxpose.xlu0.b32.cont [15/16] %v618, 128
        %673 = vxpose.xlu0.b32.end [16/16] %v622, 128
        %v674 = vpop.trf.xlu0
        %v675 = vpop.trf.xlu0
        %v676 = vpop.trf.xlu0
        %v677 = vpop.trf.xlu0
        %v678 = vpop.trf.xlu0
        %v679 = vpop.trf.xlu0
        %v680 = vpop.trf.xlu0
        %v681 = vpop.trf.xlu0
        %v682 = vpop.trf.xlu0
        %v683 = vpop.trf.xlu0
        %v684 = vpop.trf.xlu0
        %v685 = vpop.trf.xlu0
        %v686 = vpop.trf.xlu0
        %v687 = vpop.trf.xlu0
        %v688 = vpop.trf.xlu0
        %v689 = vpop.trf.xlu0
        %v690 = vpack.c.bf16 %v643, %v642
        %v691 = vpack.c.bf16 %v675, %v674
        %v692 = vpack.c.bf16 %v645, %v644
        %v693 = vpack.c.bf16 %v677, %v676
        %v694 = vpack.c.bf16 %v647, %v646
        %v695 = vpack.c.bf16 %v679, %v678
        %v696 = vpack.c.bf16 %v649, %v648
        %v697 = vpack.c.bf16 %v681, %v680
        %v698 = vpack.c.bf16 %v651, %v650
        %v699 = vpack.c.bf16 %v683, %v682
        %v700 = vpack.c.bf16 %v653, %v652
        %v701 = vpack.c.bf16 %v685, %v684
        %v702 = vpack.c.bf16 %v655, %v654
        %v703 = vpack.c.bf16 %v687, %v686
        %v704 = vpack.c.bf16 %v657, %v656
        %v705 = vpack.c.bf16 %v689, %v688
        %v722 = vunpack.c.l.b16 %v690
        %v723 = vunpack.c.l.b16 %v691
        %v724 = vunpack.c.h.b16 %v690
        %v725 = vunpack.c.h.b16 %v691
        %v726 = vunpack.c.l.b16 %v692
        %v727 = vunpack.c.l.b16 %v693
        %v728 = vunpack.c.h.b16 %v692
        %v729 = vunpack.c.h.b16 %v693
        %v730 = vunpack.c.l.b16 %v694
        %v731 = vunpack.c.l.b16 %v695
        %v732 = vunpack.c.h.b16 %v694
        %v733 = vunpack.c.h.b16 %v695
        %v734 = vunpack.c.l.b16 %v696
        %v735 = vunpack.c.l.b16 %v697
        %v736 = vunpack.c.h.b16 %v696
        %v737 = vunpack.c.h.b16 %v697
        %v738 = vunpack.c.l.b16 %v698
        %v739 = vunpack.c.l.b16 %v699
        %v740 = vunpack.c.h.b16 %v698
        %v741 = vunpack.c.h.b16 %v699
        %v742 = vunpack.c.l.b16 %v700
        %v743 = vunpack.c.l.b16 %v701
        %v744 = vunpack.c.h.b16 %v700
        %v745 = vunpack.c.h.b16 %v701
        %v746 = vunpack.c.l.b16 %v702
        %v747 = vunpack.c.l.b16 %v703
        %v748 = vunpack.c.h.b16 %v702
        %v749 = vunpack.c.h.b16 %v703
        %v750 = vunpack.c.l.b16 %v704
        %v751 = vunpack.c.l.b16 %v705
        %v752 = vunpack.c.h.b16 %v704
        %v753 = vunpack.c.h.b16 %v705
        %v754 = vpack.c.b16 %v723, %v722
        %v755 = vpack.c.b16 %v725, %v724
        %v756 = vpack.c.b16 %v727, %v726
        %v757 = vpack.c.b16 %v729, %v728
        %v758 = vpack.c.b16 %v731, %v730
        %v759 = vpack.c.b16 %v733, %v732
        %v760 = vpack.c.b16 %v735, %v734
        %v761 = vpack.c.b16 %v737, %v736
        %v762 = vpack.c.b16 %v739, %v738
        %v763 = vpack.c.b16 %v741, %v740
        %v764 = vpack.c.b16 %v743, %v742
        %v765 = vpack.c.b16 %v745, %v744
        %v766 = vpack.c.b16 %v747, %v746
        %v767 = vpack.c.b16 %v749, %v748
        %v768 = vpack.c.b16 %v751, %v750
        %v769 = vpack.c.b16 %v753, %v752
        %786 = vst [vmem:[%s195] sm:$0xff] %v754
        %787 = vst [vmem:[%s195 + $0x8] sm:$0xff] %v755
        %788 = vst [vmem:[%s195 + $0x10] sm:$0xff] %v756
        %789 = vst [vmem:[%s195 + $0x18] sm:$0xff] %v757
        %790 = vst [vmem:[%s195 + $0x20] sm:$0xff] %v758
        %791 = vst [vmem:[%s195 + $0x28] sm:$0xff] %v759
        %792 = vst [vmem:[%s195 + $0x30] sm:$0xff] %v760
        %793 = vst [vmem:[%s195 + $0x38] sm:$0xff] %v761
        %794 = vst [vmem:[%s195 + $0x40] sm:$0xff] %v762
        %795 = vst [vmem:[%s195 + $0x48] sm:$0xff] %v763
        %796 = vst [vmem:[%s195 + $0x50] sm:$0xff] %v764
        %797 = vst [vmem:[%s195 + $0x58] sm:$0xff] %v765
        %798 = vst [vmem:[%s195 + $0x60] sm:$0xff] %v766
        %799 = vst [vmem:[%s195 + $0x68] sm:$0xff] %v767
        %800 = vst [vmem:[%s195 + $0x70] sm:$0xff] %v768
        %801 = vst [vmem:[%s195 + $0x78] sm:$0xff] %v769
        %v802 = vpack.c.bf16 %v474, %v470
        %v803 = vpack.c.bf16 %v484, %v480
        %v804 = vpack.c.bf16 %v494, %v490
        %v805 = vpack.c.bf16 %v504, %v500
        %v806 = vpack.c.bf16 %v514, %v510
        %v807 = vpack.c.bf16 %v524, %v520
        %v808 = vpack.c.bf16 %v534, %v530
        %v809 = vpack.c.bf16 %v544, %v540
        %v810 = vpack.c.bf16 %v554, %v550
        %v811 = vpack.c.bf16 %v564, %v560
        %v812 = vpack.c.bf16 %v574, %v570
        %v813 = vpack.c.bf16 %v584, %v580
        %v814 = vpack.c.bf16 %v594, %v590
        %v815 = vpack.c.bf16 %v604, %v600
        %v816 = vpack.c.bf16 %v614, %v610
        %v817 = vpack.c.bf16 %v624, %v620
        %v834 = vunpack.c.l.b16 %v802
        %v835 = vunpack.c.h.b16 %v802
        %v836 = vunpack.c.l.b16 %v803
        %v837 = vunpack.c.h.b16 %v803
        %v838 = vunpack.c.l.b16 %v804
        %v839 = vunpack.c.h.b16 %v804
        %v840 = vunpack.c.l.b16 %v805
        %v841 = vunpack.c.h.b16 %v805
        %v842 = vunpack.c.l.b16 %v806
        %v843 = vunpack.c.h.b16 %v806
        %v844 = vunpack.c.l.b16 %v807
        %v845 = vunpack.c.h.b16 %v807
        %v846 = vunpack.c.l.b16 %v808
        %v847 = vunpack.c.h.b16 %v808
        %v848 = vunpack.c.l.b16 %v809
        %v849 = vunpack.c.h.b16 %v809
        %v850 = vunpack.c.l.b16 %v810
        %v851 = vunpack.c.h.b16 %v810
        %v852 = vunpack.c.l.b16 %v811
        %v853 = vunpack.c.h.b16 %v811
        %v854 = vunpack.c.l.b16 %v812
        %v855 = vunpack.c.h.b16 %v812
        %v856 = vunpack.c.l.b16 %v813
        %v857 = vunpack.c.h.b16 %v813
        %v858 = vunpack.c.l.b16 %v814
        %v859 = vunpack.c.h.b16 %v814
        %v860 = vunpack.c.l.b16 %v815
        %v861 = vunpack.c.h.b16 %v815
        %v862 = vunpack.c.l.b16 %v816
        %v863 = vunpack.c.h.b16 %v816
        %v864 = vunpack.c.l.b16 %v817
        %v865 = vunpack.c.h.b16 %v817
        %v866 = vpack.c.b16 %v834, %v834
        %v867 = vpack.c.b16 %v835, %v835
        %v868 = vpack.c.b16 %v836, %v836
        %v869 = vpack.c.b16 %v837, %v837
        %v870 = vpack.c.b16 %v838, %v838
        %v871 = vpack.c.b16 %v839, %v839
        %v872 = vpack.c.b16 %v840, %v840
        %v873 = vpack.c.b16 %v841, %v841
        %v874 = vpack.c.b16 %v842, %v842
        %v875 = vpack.c.b16 %v843, %v843
        %v876 = vpack.c.b16 %v844, %v844
        %v877 = vpack.c.b16 %v845, %v845
        %v878 = vpack.c.b16 %v846, %v846
        %v879 = vpack.c.b16 %v847, %v847
        %v880 = vpack.c.b16 %v848, %v848
        %v881 = vpack.c.b16 %v849, %v849
        %v882 = vpack.c.b16 %v850, %v850
        %v883 = vpack.c.b16 %v851, %v851
        %v884 = vpack.c.b16 %v852, %v852
        %v885 = vpack.c.b16 %v853, %v853
        %v886 = vpack.c.b16 %v854, %v854
        %v887 = vpack.c.b16 %v855, %v855
        %v888 = vpack.c.b16 %v856, %v856
        %v889 = vpack.c.b16 %v857, %v857
        %v890 = vpack.c.b16 %v858, %v858
        %v891 = vpack.c.b16 %v859, %v859
        %v892 = vpack.c.b16 %v860, %v860
        %v893 = vpack.c.b16 %v861, %v861
        %v894 = vpack.c.b16 %v862, %v862
        %v895 = vpack.c.b16 %v863, %v863
        %v896 = vpack.c.b16 %v864, %v864
        %v897 = vpack.c.b16 %v865, %v865
        %930 = vst [vmem:[%s202] sm:$0xf] %v866
        %931 = vst [vmem:[%s202 + $0x4] sm:$0xf] %v867
        %932 = vst [vmem:[%s202 + $0x8] sm:$0xf] %v868
        %933 = vst [vmem:[%s202 + $0xc] sm:$0xf] %v869
        %934 = vst [vmem:[%s202 + $0x10] sm:$0xf] %v870
        %935 = vst [vmem:[%s202 + $0x14] sm:$0xf] %v871
        %936 = vst [vmem:[%s202 + $0x18] sm:$0xf] %v872
        %937 = vst [vmem:[%s202 + $0x1c] sm:$0xf] %v873
        %938 = vst [vmem:[%s202 + $0x20] sm:$0xf] %v874
        %939 = vst [vmem:[%s202 + $0x24] sm:$0xf] %v875
        %940 = vst [vmem:[%s202 + $0x28] sm:$0xf] %v876
        %941 = vst [vmem:[%s202 + $0x2c] sm:$0xf] %v877
        %942 = vst [vmem:[%s202 + $0x30] sm:$0xf] %v878
        %943 = vst [vmem:[%s202 + $0x34] sm:$0xf] %v879
        %944 = vst [vmem:[%s202 + $0x38] sm:$0xf] %v880
        %945 = vst [vmem:[%s202 + $0x3c] sm:$0xf] %v881
        %946 = vst [vmem:[%s202 + $0x40] sm:$0xf] %v882
        %947 = vst [vmem:[%s202 + $0x44] sm:$0xf] %v883
        %948 = vst [vmem:[%s202 + $0x48] sm:$0xf] %v884
        %949 = vst [vmem:[%s202 + $0x4c] sm:$0xf] %v885
        %950 = vst [vmem:[%s202 + $0x50] sm:$0xf] %v886
        %951 = vst [vmem:[%s202 + $0x54] sm:$0xf] %v887
        %952 = vst [vmem:[%s202 + $0x58] sm:$0xf] %v888
        %953 = vst [vmem:[%s202 + $0x5c] sm:$0xf] %v889
        %954 = vst [vmem:[%s202 + $0x60] sm:$0xf] %v890
        %955 = vst [vmem:[%s202 + $0x64] sm:$0xf] %v891
        %956 = vst [vmem:[%s202 + $0x68] sm:$0xf] %v892
        %957 = vst [vmem:[%s202 + $0x6c] sm:$0xf] %v893
        %958 = vst [vmem:[%s202 + $0x70] sm:$0xf] %v894
        %959 = vst [vmem:[%s202 + $0x74] sm:$0xf] %v895
        %960 = vst [vmem:[%s202 + $0x78] sm:$0xf] %v896
        %961 = vst [vmem:[%s202 + $0x7c] sm:$0xf] %v897
        %s962 = sand.u32 %s98, 1
        %s963 = scalar_lea.sflag [#allocation3], %s962
        %s964 = sand.u32 %s98, 1
        %s965 = smul.addr %s964, 128
        %s966 = scalar_lea.vmem [#allocation2], %s965
        %s967 = sand.u32 %s124, 1
        %s968 = scalar_lea.sflag [#allocation5], %s967
        %s969 = sand.u32 %s124, 1
        %s970 = smul.addr %s969, 128
        %s971 = scalar_lea.vmem [#allocation4], %s970
        // Predicated region
        $region33: #{tpu_custom_call.1} parent=31 // pred_check
          %p972 = pneg %p108
        $region34: #{tpu_custom_call.1} parent=31 // pred_check_branch
          %974 = sbr.rel (%p972) target = $region36
        $region35: #{tpu_custom_call.1} parent=31 // pred_region
          %s975 = smul.u32 2, %s22
          %s977 = ssub.s32 2048, 2048
          %978 = vsyncadd %s963, %s977
          %s979 = smul.addr %s975, 64
          %s980 = scalar_lea.hbm %s3, %s979
          %s981 = sshll.u32 %s966, 4
          %s982 = int_to_ptr.vmem [resolvable:$true] %s981
          %987 = dma.vmem_to_hbm [thread:$0]  %s982, 2048, %s980, %s963, 128, 256, 8
        $region36: #{tpu_custom_call.1} parent=31 // pred_fallthru
          _
        // Predicated region
        $region37: #{tpu_custom_call.1} parent=31 // pred_check
          %p988 = pneg %p134
        $region38: #{tpu_custom_call.1} parent=31 // pred_check_branch
          %990 = sbr.rel (%p988) target = $region40
        $region39: #{tpu_custom_call.1} parent=31 // pred_region
          %s991 = smul.u32 32, %s22
          %s993 = ssub.s32 2048, 2048
          %994 = vsyncadd %s968, %s993
          %s995 = smul.addr %s991, 64
          %s996 = scalar_lea.hbm %s4, %s995
          %s997 = sshll.u32 %s971, 4
          %s998 = int_to_ptr.vmem [resolvable:$true] %s997
          %1003 = dma.vmem_to_hbm [thread:$0]  %s998, 2048, %s996, %s968, 64, 64, 4
        $region40: #{tpu_custom_call.1} parent=31 // pred_fallthru
          _
      $region32: #{tpu_custom_call.1} parent=5 // pred_fallthru
        _
      %p1004 = scmp.le.s32.totalorder 2, %s17
      // Predicated region
      $region41: #{tpu_custom_call.1} parent=5 // pred_check
        %p1005 = pneg %p1004
      $region42: #{tpu_custom_call.1} parent=5 // pred_check_branch
        %1007 = sbr.rel (%p1005) target = $region44
      $region43: #{tpu_custom_call.1} parent=5 // pred_region
        %s1008 = ssub.s32 %s17, 2
        // Predicated region
        $region45: #{tpu_custom_call.1} parent=43 // pred_check
          %p1009 = pneg %p114
        $region46: #{tpu_custom_call.1} parent=43 // pred_check_branch
          %1011 = sbr.rel (%p1009) target = $region48
        $region47: #{tpu_custom_call.1} parent=43 // pred_region
          %s1012 = sand.u32 %s99, 1
          %s1013 = scalar_lea.sflag [#allocation3], %s1012
          %s1014 = sand.u32 %s99, 1
          %s1015 = smul.addr %s1014, 128
          %s1016 = scalar_lea.vmem [#allocation2], %s1015
          %1017 = dma.done %s1013, 2048
        $region48: #{tpu_custom_call.1} parent=43 // pred_fallthru
          _
        // Predicated region
        $region49: #{tpu_custom_call.1} parent=43 // pred_check
          %p1018 = pneg %p140
        $region50: #{tpu_custom_call.1} parent=43 // pred_check_branch
          %1020 = sbr.rel (%p1018) target = $region52
        $region51: #{tpu_custom_call.1} parent=43 // pred_region
          %s1021 = sand.u32 %s125, 1
          %s1022 = scalar_lea.sflag [#allocation5], %s1021
          %s1023 = sand.u32 %s125, 1
          %s1024 = smul.addr %s1023, 128
          %s1025 = scalar_lea.vmem [#allocation4], %s1024
          %1026 = dma.done %s1022, 2048
        $region52: #{tpu_custom_call.1} parent=43 // pred_fallthru
          _
      $region44: #{tpu_custom_call.1} parent=5 // pred_fallthru
        _
    $region6: #{tpu_custom_call.1} parent=1 // loop_footer
      %s21 = sadd.s32 1, %s17
    $region7: #{tpu_custom_call.1} parent=1 // loop_footer_branch
      %16 = sbr.rel target = $region3
    $region8: #{tpu_custom_call.1} parent=1 // loop_exit
      _
    %1027 = vsyncpa [#allocation3], 1
    %s1028 = scalar_lea.sflag [#allocation3], 1
    %1029 = vsyncpa %s1028, 1
    %1030 = vsyncpa [#allocation5], 1
    %s1031 = scalar_lea.sflag [#allocation5], 1
    %1032 = vsyncpa %s1031, 1

</llo_original>
